<compile_context>
chip_gen: v7x
topology: tpu7x:2x2x1
jax: 0.10.0
libtpu: 0.0.40
codegen_flags: <defaults>
</compile_context>

<pallas_src>
import jax
import jax.numpy as jnp
from jax import lax
from jax.experimental import pallas as pl
from jax.experimental.pallas import tpu as pltpu

_EPS = 1e-6


def _round_up(n, m):
    return ((n + m - 1) // m) * m


def _my_loss_kernel(x_ref, y_ref, o_ref, dot_acc, sxx_acc, syy_acc):
    """One (block_b, block_d) tile; grid axis 1 (feature) is the reduction."""
    k = pl.program_id(1)

    @pl.when(k == 0)
    def _init():
        dot_acc[...] = jnp.zeros_like(dot_acc)
        sxx_acc[...] = jnp.zeros_like(sxx_acc)
        syy_acc[...] = jnp.zeros_like(syy_acc)

    x = x_ref[...].astype(jnp.float32)
    y = y_ref[...].astype(jnp.float32)
    dot_acc[...] += jnp.sum(x * y, axis=1, keepdims=True)
    sxx_acc[...] += jnp.sum(x * x, axis=1, keepdims=True)
    syy_acc[...] += jnp.sum(y * y, axis=1, keepdims=True)

    @pl.when(k == pl.num_programs(1) - 1)
    def _finalize():
        eps2 = jnp.float32(_EPS * _EPS)
        # PyTorch clamps the *product* of the norms: denom = max(||x||*||y||, eps)
        denom_sq = jnp.maximum(sxx_acc[...] * syy_acc[...], eps2)
        cos = dot_acc[...] * lax.rsqrt(denom_sq)
        o_ref[...] = (jnp.float32(1.0) - cos).astype(o_ref.dtype)


def my_loss(x, y, *, block_b=1024, block_d=1024):
    """1 - cosine_similarity(x, y, dim=1, eps=1e-6). x, y: (B, D) -> (B,) f32."""
    assert x.shape == y.shape and x.ndim == 2
    B, D = x.shape

    # Large tiles keep the DMA engine streaming (kernel is HBM-bound); clamp to
    # the (padded) problem size.
    bb = min(block_b, _round_up(B, 8))
    bd = min(block_d, _round_up(D, 128))
    # Keep >=2 batch grid steps when there is enough work so v7x's second
    # TensorCore (sharded over the "parallel" batch axis) is not left idle.
    if _round_up(B, 8) >= 16 and pl.cdiv(_round_up(B, 8), bb) < 2:
        bb = _round_up(pl.cdiv(_round_up(B, 8), 2), 8)

    B_pad = _round_up(B, bb)
    D_pad = _round_up(D, bd)
    if (B_pad, D_pad) != (B, D):
        # Zero padding is exact: padded feature columns add nothing to the
        # reductions; padded batch rows are sliced away below.
        pad = ((0, B_pad - B), (0, D_pad - D))
        x = jnp.pad(x, pad)
        y = jnp.pad(y, pad)

    nb = B_pad // bb
    nd = D_pad // bd

    # Explicit VMEM budget: 2 inputs x double-buffered tiles + small scratch/out,
    # with headroom; capped so it fits v7x's 64 MiB physical VMEM.
    itemsize = jnp.dtype(x.dtype).itemsize
    vmem_limit = int(min(max(4 * bb * bd * itemsize + (8 << 20), 16 << 20), 48 << 20))

    out = pl.pallas_call(
        _my_loss_kernel,
        out_shape=jax.ShapeDtypeStruct((B_pad, 1), jnp.float32),
        grid_spec=pltpu.PrefetchScalarGridSpec(
            num_scalar_prefetch=0,
            grid=(nb, nd),
            in_specs=[
                pl.BlockSpec((bb, bd), lambda i, k: (i, k)),
                pl.BlockSpec((bb, bd), lambda i, k: (i, k)),
            ],
            out_specs=pl.BlockSpec((bb, 1), lambda i, k: (i, 0)),
            scratch_shapes=[
                pltpu.VMEM((bb, 1), jnp.float32),  # sum(x*y)
                pltpu.VMEM((bb, 1), jnp.float32),  # sum(x*x)
                pltpu.VMEM((bb, 1), jnp.float32),  # sum(y*y)
            ],
        ),
        compiler_params=pltpu.CompilerParams(
            dimension_semantics=("parallel", "arbitrary"),
            vmem_limit_bytes=vmem_limit,
        ),
    )(x, y)
    return out[:B, 0]


def my_loss_ref(x, y):
    x = x.astype(jnp.float32)
    y = y.astype(jnp.float32)
    dot = jnp.sum(x * y, axis=1)
    sxx = jnp.sum(x * x, axis=1)
    syy = jnp.sum(y * y, axis=1)
    # nn.CosineSimilarity clamps the product of the norms at eps.
    denom = jnp.maximum(jnp.sqrt(sxx) * jnp.sqrt(syy), _EPS)
    return 1.0 - dot / denom


if __name__ == "__main__":
    key = jax.random.PRNGKey(0)
    k1, k2, k3, k4 = jax.random.split(key, 4)

    # Small shapes that exercise the multi-step feature reduction (grid = (2, 3)).
    B, D = 16, 384
    x = jax.random.normal(k1, (B, D), dtype=jnp.float32)
    y = jax.random.normal(k2, (B, D), dtype=jnp.float32)
    out = jax.block_until_ready(my_loss(x, y, block_b=8, block_d=128))
    ref = my_loss_ref(x, y)
    assert out.shape == (B,)
    assert jnp.allclose(out, ref, atol=1e-5, rtol=1e-5), (out, ref)

    # Awkward sizes exercise the zero-padding path with the default (large) tiles.
    B2, D2 = 10, 200
    x2 = jax.random.normal(k3, (B2, D2), dtype=jnp.float32)
    y2 = jax.random.normal(k4, (B2, D2), dtype=jnp.float32)
    out2 = jax.block_until_ready(my_loss(x2, y2))
    ref2 = my_loss_ref(x2, y2)
    assert out2.shape == (B2,)
    assert jnp.allclose(out2, ref2, atol=1e-5, rtol=1e-5), (out2, ref2)

    print("KERNEL_OK")
</pallas_src>

<mosaic_0001>
module attributes {stable_mosaic.version = 11 : i64} {
  func.func @_my_loss_kernel(%arg0: i32, %arg1: i32, %arg2: memref<8x128xf32, #tpu.memory_space<vmem>>, %arg3: memref<8x128xf32, #tpu.memory_space<vmem>>, %arg4: memref<8x1xf32, #tpu.memory_space<vmem>>, %arg5: memref<8x1xf32, #tpu.memory_space<vmem>>, %arg6: memref<8x1xf32, #tpu.memory_space<vmem>>, %arg7: memref<8x1xf32, #tpu.memory_space<vmem>>) attributes {dimension_semantics = [#tpu.dimension_semantics<parallel>, #tpu.dimension_semantics<arbitrary>], iteration_bounds = array<i64: 2, 3>, scalar_prefetch = 0 : i64, scratch_operands = 3 : i64, tpu.core_type = #tpu.core_type<tc>, window_params = [{transform_indices = @transform_0, window_bounds = array<i64: 8, 128>}, {transform_indices = @transform_1, window_bounds = array<i64: 8, 128>}, {transform_indices = @transform_2, window_bounds = array<i64: 8, 1>}]} {
    %c0_i32 = arith.constant 0 : i32
    %0 = arith.cmpi eq, %arg1, %c0_i32 : i32
    %1 = arith.extui %0 : i1 to i32
    %c0_i32_0 = arith.constant 0 : i32
    %2 = arith.cmpi ne, %1, %c0_i32_0 : i32
    scf.if %2 {
      %cst_19 = arith.constant 0.000000e+00 : f32
      %26 = vector.broadcast %cst_19 : f32 to vector<8x1xf32>
      %c0_20 = arith.constant 0 : index
      %c0_21 = arith.constant 0 : index
      %27 = vector.load %arg5[%c0_20, %c0_21] : memref<8x1xf32, #tpu.memory_space<vmem>>, vector<8x1xf32>
      tpu.vector_store %arg5[%c0_20, %c0_21], %26 {strides = array<i32>} : memref<8x1xf32, #tpu.memory_space<vmem>>, vector<8x1xf32>,
      %cst_22 = arith.constant 0.000000e+00 : f32
      %28 = vector.broadcast %cst_22 : f32 to vector<8x1xf32>
      %c0_23 = arith.constant 0 : index
      %c0_24 = arith.constant 0 : index
      %29 = vector.load %arg6[%c0_23, %c0_24] : memref<8x1xf32, #tpu.memory_space<vmem>>, vector<8x1xf32>
      tpu.vector_store %arg6[%c0_23, %c0_24], %28 {strides = array<i32>} : memref<8x1xf32, #tpu.memory_space<vmem>>, vector<8x1xf32>,
      %cst_25 = arith.constant 0.000000e+00 : f32
      %30 = vector.broadcast %cst_25 : f32 to vector<8x1xf32>
      %c0_26 = arith.constant 0 : index
      %c0_27 = arith.constant 0 : index
      %31 = vector.load %arg7[%c0_26, %c0_27] : memref<8x1xf32, #tpu.memory_space<vmem>>, vector<8x1xf32>
      tpu.vector_store %arg7[%c0_26, %c0_27], %30 {strides = array<i32>} : memref<8x1xf32, #tpu.memory_space<vmem>>, vector<8x1xf32>,
    } else {
    }
    %c0 = arith.constant 0 : index
    %c0_1 = arith.constant 0 : index
    %3 = vector.load %arg2[%c0, %c0_1] : memref<8x128xf32, #tpu.memory_space<vmem>>, vector<8x128xf32>
    %c0_2 = arith.constant 0 : index
    %c0_3 = arith.constant 0 : index
    %4 = vector.load %arg3[%c0_2, %c0_3] : memref<8x128xf32, #tpu.memory_space<vmem>>, vector<8x128xf32>
    %c0_4 = arith.constant 0 : index
    %c0_5 = arith.constant 0 : index
    %5 = vector.load %arg5[%c0_4, %c0_5] : memref<8x1xf32, #tpu.memory_space<vmem>>, vector<8x1xf32>
    %6 = arith.mulf %3, %4 : vector<8x128xf32>
    %cst = arith.constant dense<0.000000e+00> : vector<8xf32>
    %7 = vector.multi_reduction <add>, %6, %cst [1] : vector<8x128xf32> to vector<8xf32>
    %8 = vector.shape_cast %7 : vector<8xf32> to vector<8x1xf32>
    %9 = arith.addf %5, %8 : vector<8x1xf32>
    %c0_6 = arith.constant 0 : index
    %c0_7 = arith.constant 0 : index
    %10 = vector.load %arg5[%c0_6, %c0_7] : memref<8x1xf32, #tpu.memory_space<vmem>>, vector<8x1xf32>
    tpu.vector_store %arg5[%c0_6, %c0_7], %9 {strides = array<i32>} : memref<8x1xf32, #tpu.memory_space<vmem>>, vector<8x1xf32>,
    %c0_8 = arith.constant 0 : index
    %c0_9 = arith.constant 0 : index
    %11 = vector.load %arg6[%c0_8, %c0_9] : memref<8x1xf32, #tpu.memory_space<vmem>>, vector<8x1xf32>
    %12 = arith.mulf %3, %3 : vector<8x128xf32>
    %cst_10 = arith.constant dense<0.000000e+00> : vector<8xf32>
    %13 = vector.multi_reduction <add>, %12, %cst_10 [1] : vector<8x128xf32> to vector<8xf32>
    %14 = vector.shape_cast %13 : vector<8xf32> to vector<8x1xf32>
    %15 = arith.addf %11, %14 : vector<8x1xf32>
    %c0_11 = arith.constant 0 : index
    %c0_12 = arith.constant 0 : index
    %16 = vector.load %arg6[%c0_11, %c0_12] : memref<8x1xf32, #tpu.memory_space<vmem>>, vector<8x1xf32>
    tpu.vector_store %arg6[%c0_11, %c0_12], %15 {strides = array<i32>} : memref<8x1xf32, #tpu.memory_space<vmem>>, vector<8x1xf32>,
    %c0_13 = arith.constant 0 : index
    %c0_14 = arith.constant 0 : index
    %17 = vector.load %arg7[%c0_13, %c0_14] : memref<8x1xf32, #tpu.memory_space<vmem>>, vector<8x1xf32>
    %18 = arith.mulf %4, %4 : vector<8x128xf32>
    %cst_15 = arith.constant dense<0.000000e+00> : vector<8xf32>
    %19 = vector.multi_reduction <add>, %18, %cst_15 [1] : vector<8x128xf32> to vector<8xf32>
    %20 = vector.shape_cast %19 : vector<8xf32> to vector<8x1xf32>
    %21 = arith.addf %17, %20 : vector<8x1xf32>
    %c0_16 = arith.constant 0 : index
    %c0_17 = arith.constant 0 : index
    %22 = vector.load %arg7[%c0_16, %c0_17] : memref<8x1xf32, #tpu.memory_space<vmem>>, vector<8x1xf32>
    tpu.vector_store %arg7[%c0_16, %c0_17], %21 {strides = array<i32>} : memref<8x1xf32, #tpu.memory_space<vmem>>, vector<8x1xf32>,
    %c2_i32 = arith.constant 2 : i32
    %23 = arith.cmpi eq, %arg1, %c2_i32 : i32
    %24 = arith.extui %23 : i1 to i32
    %c0_i32_18 = arith.constant 0 : i32
    %25 = arith.cmpi ne, %24, %c0_i32_18 : i32
    scf.if %25 {
      %c0_19 = arith.constant 0 : index
      %c0_20 = arith.constant 0 : index
      %26 = vector.load %arg6[%c0_19, %c0_20] : memref<8x1xf32, #tpu.memory_space<vmem>>, vector<8x1xf32>
      %c0_21 = arith.constant 0 : index
      %c0_22 = arith.constant 0 : index
      %27 = vector.load %arg7[%c0_21, %c0_22] : memref<8x1xf32, #tpu.memory_space<vmem>>, vector<8x1xf32>
      %28 = arith.mulf %26, %27 : vector<8x1xf32>
      %cst_23 = arith.constant 9.99999996E-13 : f32
      %29 = vector.broadcast %cst_23 : f32 to vector<8x1xf32>
      %30 = arith.maximumf %28, %29 : vector<8x1xf32>
      %c0_24 = arith.constant 0 : index
      %c0_25 = arith.constant 0 : index
      %31 = vector.load %arg5[%c0_24, %c0_25] : memref<8x1xf32, #tpu.memory_space<vmem>>, vector<8x1xf32>
      %32 = math.rsqrt %30 : vector<8x1xf32>
      %33 = arith.mulf %31, %32 : vector<8x1xf32>
      %cst_26 = arith.constant 1.000000e+00 : f32
      %34 = vector.broadcast %cst_26 : f32 to vector<8x1xf32>
      %35 = arith.subf %34, %33 : vector<8x1xf32>
      %c0_27 = arith.constant 0 : index
      %c0_28 = arith.constant 0 : index
      %36 = vector.load %arg4[%c0_27, %c0_28] : memref<8x1xf32, #tpu.memory_space<vmem>>, vector<8x1xf32>
      tpu.vector_store %arg4[%c0_27, %c0_28], %35 {strides = array<i32>} : memref<8x1xf32, #tpu.memory_space<vmem>>, vector<8x1xf32>,
    } else {
    }
    return
  }
  func.func @transform_0(%arg0: i32, %arg1: i32) -> (i32, i32) {
    %c0_i32 = arith.constant 0 : i32
    return %arg0, %arg1 : i32, i32
  }
  func.func @transform_1(%arg0: i32, %arg1: i32) -> (i32, i32) {
    %c0_i32 = arith.constant 0 : i32
    return %arg0, %arg1 : i32, i32
  }
  func.func @transform_2(%arg0: i32, %arg1: i32) -> (i32, i32) {
    %c0_i32 = arith.constant 0 : i32
    %c0_i32_0 = arith.constant 0 : i32
    return %arg0, %c0_i32 : i32, i32
  }
}

</mosaic_0001>

<llo_original>
// kernel: tpu_custom_call.1
$region0: #{tpu_custom_call.1}
  #allocation0 [shape = 'u32[]', space=smem, size = 0x4, offset = 0x4, fixed_abs, tag = 'smem constant byte address 0x4 - core index']
  #allocation1 [shape = 'u32[144,128]{1,0:T(1,128)}', space=vmem, size = 0x12000, scoped, tag = 'internal scratch']
  #allocation2 [shape = 'f32[8,1]{1,0:T(8,128)}', space=vmem, size = 0x1000, scoped, tag = 'scratch operand']
  #allocation3 [shape = 'f32[8,1]{1,0:T(8,128)}', space=vmem, size = 0x1000, scoped, tag = 'scratch operand']
  #allocation4 [shape = 'f32[8,1]{1,0:T(8,128)}', space=vmem, size = 0x1000, scoped, tag = 'scratch operand']
  %s0 = inlined_call_operand.hbm [shape: f32[16,384], index: 0, kind: input, shape index: {}]
  %s1 = inlined_call_operand.hbm [shape: f32[16,384], index: 1, kind: input, shape index: {}]
  %s2 = inlined_call_operand.vmem [shape: f32[16,1], index: 2, kind: output, shape index: {}]
  %s3 = sld [smem:[#allocation0]]
  $region57: #{tpu_custom_call.1} parent=0
    _
  %s5 = ssub.s32 1, %s3
  %s6 = scalar_select 0, %s5, %s3
  $region1: #{tpu_custom_call.1} parent=0
    #allocation5 [shape = 'u8[8192]{0}', space=vmem, size = 0x2000, scoped, tag = 'input window, operand 0']
    #allocation6 [shape = 's32[2]{0}', space=sflag, size = 0x8, scoped, tag = 'scoped memory for tpu_custom_call.1']
    #allocation7 [shape = 'u8[8192]{0}', space=vmem, size = 0x2000, scoped, tag = 'input window, operand 1']
    #allocation8 [shape = 's32[2]{0}', space=sflag, size = 0x8, scoped, tag = 'scoped memory for tpu_custom_call.1']
    %7 = vsyncpa [#allocation6], 0
    %s8 = scalar_lea.sflag [#allocation6], 1
    %9 = vsyncpa %s8, 0
    %10 = vsyncpa [#allocation8], 0
    %s11 = scalar_lea.sflag [#allocation8], 1
    %12 = vsyncpa %s11, 0
    loop: start=0, step=1, limit=8
    $region2: #{tpu_custom_call.1} parent=1 // loop_pre_header
      _
    $region3: #{tpu_custom_call.1} parent=1 // loop_header
      %s14 = sphi 0, %s18
      %p15 = scmp.ge.s32.totalorder %s14, 8
      %s21 = sphi 0, %s33
      %s22 = sphi 0, %s29
      %s23 = sphi 0, %s21
      %s24 = sphi 0, %s22
      %s25 = sphi 0, %s23
      %s26 = sphi 0, %s24
      %s38 = sphi 0, %s40
      %s41 = sphi 0, %s38
      %s42 = sphi 0, %s41
      %s58 = sphi 0, %s42
      %s66 = sphi 0, %s68
      %s69 = sphi 0, %s66
      %s70 = sphi 0, %s69
      %s86 = sphi 0, %s70
      %s92 = sphi 0, %s94
      %s95 = sphi 0, %s92
      %s96 = sphi 0, %s95
      %s112 = sphi 0, %s96
    $region4: #{tpu_custom_call.1} parent=1 // loop_header_branch
      %17 = sbr.rel (%p15) target = $region8
    $region5: #{tpu_custom_call.1} parent=1 // loop_body
      %s19 = ssub.s32 %s14, 1
      %s20 = ssub.s32 %s14, 2
      %s27 = sadd.s32 1, %s22
      %p28 = scmp.ge.s32.totalorder %s27, 3
      %s29 = scalar_select %p28, 0, %s27
      %s30 = sadd.s32 1, %s21
      %s31 = scalar_select %p28, %s30, %s21
      %p32 = scmp.ge.s32.totalorder %s31, 2
      %s33 = scalar_select %p32, 0, %s31
      %s34 = ssub.s32 %s21, %s33
      %s35 = ssub.s32 %s22, %s29
      %s36 = sor.u32 %s34, %s35
      %p37 = scmp.eq.s32.totalorder %s36, 0
      %s39 = sadd.s32 %s38, 1
      %s40 = scalar_select %p37, %s38, %s39
      %p43 = pneg %p37
      %p44 = scmp.eq.s32.totalorder %s14, 5
      %p45 = por %p43, %p44
      %p46 = scmp.ne.s32.totalorder %s38, %s41
      %p47 = scmp.eq.s32.totalorder %s14, 0
      %p48 = por %p46, %p47
      %p49 = scmp.ne.s32.totalorder %s38, %s41
      %p50 = scmp.eq.s32.totalorder %s19, 5
      %p51 = por %p49, %p50
      %p52 = scmp.ne.s32.totalorder %s41, %s42
      %p53 = scmp.eq.s32.totalorder %s19, 0
      %p54 = por %p52, %p53
      %p55 = scmp.ne.s32.totalorder %s41, %s42
      %p56 = scmp.eq.s32.totalorder %s20, 5
      %p57 = por %p55, %p56
      %p59 = scmp.ne.s32.totalorder %s42, %s58
      %p60 = scmp.eq.s32.totalorder %s20, 0
      %p61 = por %p59, %p60
      %s62 = ssub.s32 %s21, %s33
      %s63 = ssub.s32 %s22, %s29
      %s64 = sor.u32 %s62, %s63
      %p65 = scmp.eq.s32.totalorder %s64, 0
      %s67 = sadd.s32 %s66, 1
      %s68 = scalar_select %p65, %s66, %s67
      %p71 = pneg %p65
      %p72 = scmp.eq.s32.totalorder %s14, 5
      %p73 = por %p71, %p72
      %p74 = scmp.ne.s32.totalorder %s66, %s69
      %p75 = scmp.eq.s32.totalorder %s14, 0
      %p76 = por %p74, %p75
      %p77 = scmp.ne.s32.totalorder %s66, %s69
      %p78 = scmp.eq.s32.totalorder %s19, 5
      %p79 = por %p77, %p78
      %p80 = scmp.ne.s32.totalorder %s69, %s70
      %p81 = scmp.eq.s32.totalorder %s19, 0
      %p82 = por %p80, %p81
      %p83 = scmp.ne.s32.totalorder %s69, %s70
      %p84 = scmp.eq.s32.totalorder %s20, 5
      %p85 = por %p83, %p84
      %p87 = scmp.ne.s32.totalorder %s70, %s86
      %p88 = scmp.eq.s32.totalorder %s20, 0
      %p89 = por %p87, %p88
      %s90 = ssub.s32 %s21, %s33
      %p91 = scmp.eq.s32.totalorder %s90, 0
      %s93 = sadd.s32 %s92, 1
      %s94 = scalar_select %p91, %s92, %s93
      %p97 = pneg %p91
      %p98 = scmp.eq.s32.totalorder %s14, 5
      %p99 = por %p97, %p98
      %p100 = scmp.ne.s32.totalorder %s92, %s95
      %p101 = scmp.eq.s32.totalorder %s14, 0
      %p102 = por %p100, %p101
      %p103 = scmp.ne.s32.totalorder %s92, %s95
      %p104 = scmp.eq.s32.totalorder %s19, 5
      %p105 = por %p103, %p104
      %p106 = scmp.ne.s32.totalorder %s95, %s96
      %p107 = scmp.eq.s32.totalorder %s19, 0
      %p108 = por %p106, %p107
      %p109 = scmp.ne.s32.totalorder %s95, %s96
      %p110 = scmp.eq.s32.totalorder %s20, 5
      %p111 = por %p109, %p110
      %p113 = scmp.ne.s32.totalorder %s96, %s112
      %p114 = scmp.eq.s32.totalorder %s20, 0
      %p115 = por %p113, %p114
      %p116 = scmp.le.s32.totalorder 1, %s14
      %p117 = scmp.lt.s32.totalorder %s14, 7
      %p118 = pnand %p116, %p117
      %p119 = pneg %p118
      // Predicated region
      $region9: #{tpu_custom_call.1} parent=5 // pred_check
        _
      $region10: #{tpu_custom_call.1} parent=5 // pred_check_branch
        %121 = sbr.rel (%p118) target = $region12
      $region11: #{tpu_custom_call.1} parent=5 // pred_region
        %s122 = ssub.s32 %s14, 1
      $region12: #{tpu_custom_call.1} parent=5 // pred_fallthru
        _
      %p123 = scmp.lt.s32.totalorder %s14, 6
      // Predicated region
      $region13: #{tpu_custom_call.1} parent=5 // pred_check
        %p124 = pneg %p123
      $region14: #{tpu_custom_call.1} parent=5 // pred_check_branch
        %126 = sbr.rel (%p124) target = $region16
      $region15: #{tpu_custom_call.1} parent=5 // pred_region
        // Predicated region
        $region17: #{tpu_custom_call.1} parent=15 // pred_check
          %p127 = pneg %p48
        $region18: #{tpu_custom_call.1} parent=15 // pred_check_branch
          %129 = sbr.rel (%p127) target = $region20
        $region19: #{tpu_custom_call.1} parent=15 // pred_region
          %s130 = sand.u32 %s38, 1
          %s131 = scalar_lea.sflag [#allocation6], %s130
          %s132 = sand.u32 %s38, 1
          %s133 = smul.addr %s132, 8
          %s134 = scalar_lea.vmem [#allocation5], %s133
          %s136 = ssub.s32 128, 128
          %137 = vsyncadd %s131, %s136
          %s138 = smul.addr %s21, 3
          %s139 = sadd.s32 %s22, %s138
          %s140 = smul.addr %s139, 128
          %s141 = scalar_lea.hbm %s0, %s140
          %s143 = sshll.u32 %s134, 4
          %s144 = int_to_ptr.vmem [resolvable:$true] %s143
          %146 = dma.hbm_to_vmem [thread:$0]  %s141, 128, %s144, %s131
        $region20: #{tpu_custom_call.1} parent=15 // pred_fallthru
          _
        // Predicated region
        $region21: #{tpu_custom_call.1} parent=15 // pred_check
          %p147 = pneg %p76
        $region22: #{tpu_custom_call.1} parent=15 // pred_check_branch
          %149 = sbr.rel (%p147) target = $region24
        $region23: #{tpu_custom_call.1} parent=15 // pred_region
          %s150 = sand.u32 %s66, 1
          %s151 = scalar_lea.sflag [#allocation8], %s150
          %s152 = sand.u32 %s66, 1
          %s153 = smul.addr %s152, 8
          %s154 = scalar_lea.vmem [#allocation7], %s153
          %s156 = ssub.s32 128, 128
          %157 = vsyncadd %s151, %s156
          %s158 = smul.addr %s21, 3
          %s159 = sadd.s32 %s22, %s158
          %s160 = smul.addr %s159, 128
          %s161 = scalar_lea.hbm %s1, %s160
          %s163 = sshll.u32 %s154, 4
          %s164 = int_to_ptr.vmem [resolvable:$true] %s163
          %166 = dma.hbm_to_vmem [thread:$0]  %s161, 128, %s164, %s151
        $region24: #{tpu_custom_call.1} parent=15 // pred_fallthru
          _
      $region16: #{tpu_custom_call.1} parent=5 // pred_fallthru
        _
      %p167 = scmp.le.s32.totalorder 1, %s14
      %p168 = scmp.lt.s32.totalorder %s14, 7
      %p169 = pnand %p167, %p168
      %p170 = pneg %p169
      // Predicated region
      $region25: #{tpu_custom_call.1} parent=5 // pred_check
        _
      $region26: #{tpu_custom_call.1} parent=5 // pred_check_branch
        %172 = sbr.rel (%p169) target = $region28
      $region27: #{tpu_custom_call.1} parent=5 // pred_region
        %s173 = ssub.s32 %s14, 1
        %s174 = sand.u32 %s41, 1
        %s175 = scalar_lea.sflag [#allocation6], %s174
        %s176 = sand.u32 %s41, 1
        %s177 = smul.addr %s176, 8
        %s178 = scalar_lea.vmem [#allocation5], %s177
        // Predicated region
        $region29: #{tpu_custom_call.1} parent=27 // pred_check
          %p179 = pneg %p54
        $region30: #{tpu_custom_call.1} parent=27 // pred_check_branch
          %181 = sbr.rel (%p179) target = $region32
        $region31: #{tpu_custom_call.1} parent=27 // pred_region
          %182 = dma.done %s175, 128
        $region32: #{tpu_custom_call.1} parent=27 // pred_fallthru
          _
        %s183 = sand.u32 %s69, 1
        %s184 = scalar_lea.sflag [#allocation8], %s183
        %s185 = sand.u32 %s69, 1
        %s186 = smul.addr %s185, 8
        %s187 = scalar_lea.vmem [#allocation7], %s186
        // Predicated region
        $region33: #{tpu_custom_call.1} parent=27 // pred_check
          %p188 = pneg %p82
        $region34: #{tpu_custom_call.1} parent=27 // pred_check_branch
          %190 = sbr.rel (%p188) target = $region36
        $region35: #{tpu_custom_call.1} parent=27 // pred_region
          %191 = dma.done %s184, 128
        $region36: #{tpu_custom_call.1} parent=27 // pred_fallthru
          _
        %s192 = sand.u32 %s41, 1
        %s193 = scalar_lea.sflag [#allocation6], %s192
        %s194 = sand.u32 %s41, 1
        %s195 = smul.addr %s194, 8
        %s196 = scalar_lea.vmem [#allocation5], %s195
        %p197 = pneg %p54
        %p198 = pneg %p51
        %s199 = sand.u32 %s69, 1
        %s200 = scalar_lea.sflag [#allocation8], %s199
        %s201 = sand.u32 %s69, 1
        %s202 = smul.addr %s201, 8
        %s203 = scalar_lea.vmem [#allocation7], %s202
        %p204 = pneg %p82
        %p205 = pneg %p79
        %p206 = pneg %p108
        %p207 = pneg %p105
        %p208 = scmp.lt.s32.totalorder %s23, 1
        %s209 = scalar_select %p208, %s23, 1
        %s210 = smul.addr %s209, 8
        %s211 = scalar_lea.vmem %s2, %s210
        %p212 = scmp.lt.s32.totalorder %s23, 1
        %s213 = scalar_select %p212, %s23, 1
        %s214 = smul.addr %s213, 8
        %s215 = scalar_lea.vmem %s2, %s214
        %p216 = scmp.eq.s32.totalorder %s24, 0
        // Predicated region
        $region37: #{tpu_custom_call.1} parent=27 // pred_check
          %p217 = pneg %p216
        $region38: #{tpu_custom_call.1} parent=27 // pred_check_branch
          %219 = sbr.rel (%p217) target = $region40
        $region39: #{tpu_custom_call.1} parent=27 // pred_region
          %vm220 = vcmask 7168
          %221 = vst.msk [vmem:[#allocation2] sm:$0xff] %vm220, 0.0
          %222 = vst.msk [vmem:[#allocation3] sm:$0xff] %vm220, 0.0
          %223 = vst.msk [vmem:[#allocation4] sm:$0xff] %vm220, 0.0
        $region40: #{tpu_custom_call.1} parent=27 // pred_fallthru
          _
        %v224 = vld [vmem:[%s178] sm:$0xff]
        %v225 = vld [vmem:[%s187] sm:$0xff]
        %v226 = vld [vmem:[#allocation2] sm:$0xff]
        %v227 = vmul.f32 %v224, %v225
        %228 = vadd.xlane.f32.xlu0 %v227
        %v229 = vpop.xlane.xlu0 %228
        %v230 = vadd.f32 %v226, %v229
        %vm231 = vcmask 7168
        %232 = vst.msk [vmem:[#allocation2] sm:$0xff] %vm231, %v230
        %v233 = vld [vmem:[#allocation3] sm:$0xff]
        %v234 = vmul.f32 %v224, %v224
        %235 = vadd.xlane.f32.xlu0 %v234
        %v236 = vpop.xlane.xlu0 %235
        %v237 = vadd.f32 %v233, %v236
        %238 = vst.msk [vmem:[#allocation3] sm:$0xff] %vm231, %v237
        %v239 = vld [vmem:[#allocation4] sm:$0xff]
        %v240 = vmul.f32 %v225, %v225
        %241 = vadd.xlane.f32.xlu0 %v240
        %v242 = vpop.xlane.xlu0 %241
        %v243 = vadd.f32 %v239, %v242
        %244 = vst.msk [vmem:[#allocation4] sm:$0xff] %vm231, %v243
        %p245 = scmp.eq.s32.totalorder %s24, 2
        // Predicated region
        $region41: #{tpu_custom_call.1} parent=27 // pred_check
          %p246 = pneg %p245
        $region42: #{tpu_custom_call.1} parent=27 // pred_check_branch
          %248 = sbr.rel (%p246) target = $region44
        $region43: #{tpu_custom_call.1} parent=27 // pred_region
          %v249 = vld [vmem:[#allocation3] sm:$0xff]
          %v250 = vld [vmem:[#allocation4] sm:$0xff]
          %v251 = vmul.f32 %v249, %v250
          %v252 = vmax.f32 %v251, 1e-12
          %v253 = vld [vmem:[#allocation2] sm:$0xff]
          %v254 = vrsqrt.pop %v252
          %v255 = vmul.f32 %v253, %v254
          %v256 = vsub.f32 1.0, %v255
          %257 = vst.msk [vmem:[%s215] sm:$0xff] %vm231, %v256
        $region44: #{tpu_custom_call.1} parent=27 // pred_fallthru
          _
        %p258 = scmp.lt.s32.totalorder %s23, 1
        %s259 = scalar_select %p258, %s23, 1
        %s260 = smul.addr %s259, 8
        %s261 = scalar_lea.vmem %s2, %s260
        // Predicated region
        $region45: #{tpu_custom_call.1} parent=27 // pred_check
          %p262 = pneg %p105
        $region46: #{tpu_custom_call.1} parent=27 // pred_check_branch
          %264 = sbr.rel (%p262) target = $region48
        $region47: #{tpu_custom_call.1} parent=27 // pred_region
          _
        $region48: #{tpu_custom_call.1} parent=27 // pred_fallthru
          _
      $region28: #{tpu_custom_call.1} parent=5 // pred_fallthru
        _
      %p265 = scmp.le.s32.totalorder 2, %s14
      // Predicated region
      $region49: #{tpu_custom_call.1} parent=5 // pred_check
        %p266 = pneg %p265
      $region50: #{tpu_custom_call.1} parent=5 // pred_check_branch
        %268 = sbr.rel (%p266) target = $region52
      $region51: #{tpu_custom_call.1} parent=5 // pred_region
        %s269 = ssub.s32 %s14, 2
        // Predicated region
        $region53: #{tpu_custom_call.1} parent=51 // pred_check
          %p270 = pneg %p111
        $region54: #{tpu_custom_call.1} parent=51 // pred_check_branch
          %272 = sbr.rel (%p270) target = $region56
        $region55: #{tpu_custom_call.1} parent=51 // pred_region
          %p273 = scmp.lt.s32.totalorder %s25, 1
          %s274 = scalar_select %p273, %s25, 1
          %s275 = smul.addr %s274, 8
          %s276 = scalar_lea.vmem %s2, %s275
        $region56: #{tpu_custom_call.1} parent=51 // pred_fallthru
          _
      $region52: #{tpu_custom_call.1} parent=5 // pred_fallthru
        _
    $region6: #{tpu_custom_call.1} parent=1 // loop_footer
      %s18 = sadd.s32 1, %s14
    $region7: #{tpu_custom_call.1} parent=1 // loop_footer_branch
      %13 = sbr.rel target = $region3
    $region8: #{tpu_custom_call.1} parent=1 // loop_exit
      _
    %277 = vsyncpa [#allocation6], 1
    %s278 = scalar_lea.sflag [#allocation6], 1
    %279 = vsyncpa %s278, 1
    %280 = vsyncpa [#allocation8], 1
    %s281 = scalar_lea.sflag [#allocation8], 1
    %282 = vsyncpa %s281, 1

</llo_original>
